<compile_context>
chip_gen: v6e
topology: v6e:2x2x1
jax: 0.10.0
libtpu: 0.0.40
codegen_flags: <defaults>
</compile_context>

<pallas_src>
import functools

import jax
import jax.numpy as jnp
from jax.experimental import pallas as pl
from jax.experimental.pallas import tpu as pltpu

_LANE = 128      # lane width: hidden/output feature dims padded to this
_SUBLANE = 8     # batch tile must be a multiple of this


def _round_up(x, m):
    return ((x + m - 1) // m) * m


# --------------------------------------------------------------------------
# Kernel: fused (Linear -> ReLU) * (L-1) -> Linear, all resident in VMEM.
# refs = (x_ref, w0, b0, w1, b1, ..., w_{L-1}, b_{L-1}, o_ref)
# --------------------------------------------------------------------------
def _fused_mlp_kernel(*refs, num_layers: int, use_bf16_mxu: bool):
    x_ref = refs[0]
    o_ref = refs[-1]

    # ---- Layer 0 on the VPU: fan-in is tiny (e.g. 2), so compute it as an
    #      outer-product sum instead of a K=2 MXU matmul. Keeps the input
    #      un-padded all the way from HBM. ----
    w0_ref, b0_ref = refs[1], refs[2]
    f_in = w0_ref.shape[0]
    h = x_ref[:, 0:1].astype(jnp.float32) * w0_ref[0:1, :]
    for j in range(1, f_in):                       # statically unrolled (f_in small)
        h = h + x_ref[:, j:j + 1].astype(jnp.float32) * w0_ref[j:j + 1, :]
    h = h + b0_ref[...]                            # (1, H) broadcasts over rows
    if num_layers > 1:
        h = jnp.maximum(h, 0.0)                    # ReLU (f32 on the VPU)

    # ---- Remaining layers on the MXU: all feature dims padded to 128 lanes. ----
    for i in range(1, num_layers):                 # statically unrolled
        w = refs[1 + 2 * i][...]
        b = refs[2 + 2 * i][...]
        if use_bf16_mxu:
            hm, wm = h.astype(jnp.bfloat16), w.astype(jnp.bfloat16)
        else:
            hm, wm = h, w
        h = jnp.dot(hm, wm, preferred_element_type=jnp.float32) + b
        if i != num_layers - 1:
            h = jnp.maximum(h, 0.0)

    # Store only the real output columns (tiny masked store; no padded HBM pass).
    o_ref[...] = h[:, : o_ref.shape[-1]].astype(o_ref.dtype)


# --------------------------------------------------------------------------
# Parameter init: matches MLP.init_weights() (xavier_normal_ weights, zero bias).
# Weights stored as [in_features, out_features] (transposed vs. nn.Linear;
# xavier_normal_ is symmetric in the fan dims so this is equivalent).
# --------------------------------------------------------------------------
def init_mlp_params(key, size, input_size, output_size):
    dims = [input_size] + list(size) + [output_size]
    params = []
    for i in range(len(dims) - 1):
        key, sub = jax.random.split(key)
        fan_in, fan_out = dims[i], dims[i + 1]
        std = (2.0 / (fan_in + fan_out)) ** 0.5      # xavier normal, gain=1
        w = std * jax.random.normal(sub, (fan_in, fan_out), dtype=jnp.float32)
        b = jnp.zeros((1, fan_out), dtype=jnp.float32)
        params.append((w, b))
    return params


def _pad_params(params):
    """Zero-pad feature dims to 128 lanes.

    Layer 0's fan-in dim is left un-padded (it is consumed on the VPU as an
    outer product).  Zero padding elsewhere is exact: padded weight rows /
    columns and bias lanes are 0 and ReLU(0)=0, so padded lanes stay 0.
    """
    padded = []
    for idx, (w, b) in enumerate(params):
        fi, fo = w.shape
        fi_p = fi if idx == 0 else _round_up(fi, _LANE)
        fo_p = _round_up(fo, _LANE)
        w_p = jnp.zeros((fi_p, fo_p), w.dtype).at[:fi, :fo].set(w)
        b_p = jnp.zeros((1, fo_p), b.dtype).at[:, :fo].set(b)
        padded.append((w_p, b_p))
    return padded


# --------------------------------------------------------------------------
# Wrapper: one pallas_call for the whole MLP, batch-gridded, un-padded HBM I/O.
# --------------------------------------------------------------------------
def mlp_forward(x, params, *, tile_n=2048, use_bf16_mxu=False):
    n, f_in = x.shape
    num_layers = len(params)
    out_features = params[-1][0].shape[1]
    assert params[0][0].shape[0] == f_in

    padded = _pad_params(params)

    # Batch tile: multiple of 8 sublanes; keep >= 2 grid steps when possible so
    # v7x's two TensorCores both get work (batch axis is "parallel").
    tn = min(tile_n, _round_up(n, _SUBLANE))
    if pl.cdiv(n, tn) < 2 and n > _SUBLANE:
        tn = _round_up(pl.cdiv(n, 2), _SUBLANE)
    grid = (pl.cdiv(n, tn),)

    # Un-padded input block: last dim equals the full array dim (legal), so no
    # host-side lane padding and no extra XLA pad pass.
    in_specs = [pl.BlockSpec((tn, f_in), lambda i: (i, 0))]
    flat_inputs = [x]
    for w_p, b_p in padded:
        # Constant index_map -> weights/biases stay resident in VMEM across steps.
        # (Default double-buffering of these ~200 KB is harmless; pl.Buffered(1)
        #  would shave it but is skipped to keep lowering maximally portable.)
        in_specs.append(pl.BlockSpec(w_p.shape, lambda i: (0, 0)))
        in_specs.append(pl.BlockSpec(b_p.shape, lambda i: (0, 0)))
        flat_inputs.extend([w_p, b_p])

    # Real-width output: no padded HBM writeback and no wrapper slice pass.
    out_specs = pl.BlockSpec((tn, out_features), lambda i: (i, 0))
    out_shape = jax.ShapeDtypeStruct((n, out_features), x.dtype)

    flops = 2 * n * sum(w.shape[0] * w.shape[1] for w, _ in padded)
    bytes_accessed = (
        x.size * x.dtype.itemsize
        + sum(w.size * w.dtype.itemsize + b.size * b.dtype.itemsize
              for w, b in padded)
        + n * out_features * x.dtype.itemsize
    )

    kern = functools.partial(
        _fused_mlp_kernel, num_layers=num_layers, use_bf16_mxu=use_bf16_mxu
    )
    return pl.pallas_call(
        kern,
        out_shape=out_shape,
        grid=grid,
        in_specs=in_specs,
        out_specs=out_specs,
        compiler_params=pltpu.CompilerParams(
            dimension_semantics=("parallel",),
        ),
        cost_estimate=pl.CostEstimate(
            flops=flops, transcendentals=0, bytes_accessed=bytes_accessed
        ),
    )(*flat_inputs)


def _reference_forward(x, params):
    h = x
    for i, (w, b) in enumerate(params):
        h = h @ w + b
        if i != len(params) - 1:
            h = jnp.maximum(h, 0.0)
    return h


if __name__ == "__main__":
    # Small PINN-like configuration: size=[32, 32], input_size=2, output_size=1.
    size = [32, 32]
    input_size = 2
    output_size = 1

    key = jax.random.PRNGKey(0)
    key_p, key_x1, key_x2 = jax.random.split(key, 3)
    params = init_mlp_params(key_p, size, input_size, output_size)

    # Case 1: tiny batch (single grid step, block rows == 8).
    x_small = jax.random.normal(key_x1, (8, input_size), dtype=jnp.float32)
    y_small = mlp_forward(x_small, params)
    jax.block_until_ready(y_small)
    ref_small = _reference_forward(x_small, params)
    assert y_small.shape == (8, output_size)
    assert jnp.allclose(y_small, ref_small, atol=1e-5, rtol=1e-5)

    # Case 2: batch that exercises the batch grid (>= 2 steps) + boundary masking.
    x_big = jax.random.normal(key_x2, (300, input_size), dtype=jnp.float32)
    y_big = mlp_forward(x_big, params)
    jax.block_until_ready(y_big)
    ref_big = _reference_forward(x_big, params)
    assert y_big.shape == (300, output_size)
    assert jnp.allclose(y_big, ref_big, atol=1e-5, rtol=1e-5)

    # TODO(synk): enable use_bf16_mxu=True on v6e/v7x after validating PINN accuracy.
    print("KERNEL_OK")
</pallas_src>

<mosaic_0001>
module attributes {stable_mosaic.version = 11 : i64} {
  func.func @_fused_mlp_kernel(%arg0: i32, %arg1: memref<8x2xf32, #tpu.memory_space<vmem>>, %arg2: memref<2x128xf32, #tpu.memory_space<vmem>>, %arg3: memref<1x128xf32, #tpu.memory_space<vmem>>, %arg4: memref<128x128xf32, #tpu.memory_space<vmem>>, %arg5: memref<1x128xf32, #tpu.memory_space<vmem>>, %arg6: memref<128x128xf32, #tpu.memory_space<vmem>>, %arg7: memref<1x128xf32, #tpu.memory_space<vmem>>, %arg8: memref<8x1xf32, #tpu.memory_space<vmem>>) attributes {dimension_semantics = [#tpu.dimension_semantics<parallel>], iteration_bounds = array<i64: 1>, scalar_prefetch = 0 : i64, scratch_operands = 0 : i64, tpu.core_type = #tpu.core_type<tc>, window_params = [{transform_indices = @transform_0, window_bounds = array<i64: 8, 2>}, {pipeline_mode = #tpu.pipeline_mode<synchronous>, transform_indices = @transform_1, window_bounds = array<i64: 2, 128>}, {pipeline_mode = #tpu.pipeline_mode<synchronous>, transform_indices = @transform_2, window_bounds = array<i64: 1, 128>}, {pipeline_mode = #tpu.pipeline_mode<synchronous>, transform_indices = @transform_3, window_bounds = array<i64: 128, 128>}, {pipeline_mode = #tpu.pipeline_mode<synchronous>, transform_indices = @transform_4, window_bounds = array<i64: 1, 128>}, {pipeline_mode = #tpu.pipeline_mode<synchronous>, transform_indices = @transform_5, window_bounds = array<i64: 128, 128>}, {pipeline_mode = #tpu.pipeline_mode<synchronous>, transform_indices = @transform_6, window_bounds = array<i64: 1, 128>}, {transform_indices = @transform_7, window_bounds = array<i64: 8, 1>}]} {
    %c0 = arith.constant 0 : index
    %c0_0 = arith.constant 0 : index
    %0 = vector.load %arg1[%c0, %c0_0] : memref<8x2xf32, #tpu.memory_space<vmem>>, vector<8x1xf32>
    %c0_1 = arith.constant 0 : index
    %c0_2 = arith.constant 0 : index
    %1 = vector.load %arg2[%c0_1, %c0_2] : memref<2x128xf32, #tpu.memory_space<vmem>>, vector<1x128xf32>
    %2 = vector.broadcast %0 : vector<8x1xf32> to vector<8x128xf32>
    %3 = vector.broadcast %1 : vector<1x128xf32> to vector<8x128xf32>
    %4 = arith.mulf %2, %3 : vector<8x128xf32>
    %c0_3 = arith.constant 0 : index
    %c1 = arith.constant 1 : index
    %5 = vector.load %arg1[%c0_3, %c1] : memref<8x2xf32, #tpu.memory_space<vmem>>, vector<8x1xf32>
    %c1_4 = arith.constant 1 : index
    %c0_5 = arith.constant 0 : index
    %6 = vector.load %arg2[%c1_4, %c0_5] : memref<2x128xf32, #tpu.memory_space<vmem>>, vector<1x128xf32>
    %7 = vector.broadcast %5 : vector<8x1xf32> to vector<8x128xf32>
    %8 = vector.broadcast %6 : vector<1x128xf32> to vector<8x128xf32>
    %9 = arith.mulf %7, %8 : vector<8x128xf32>
    %10 = arith.addf %4, %9 : vector<8x128xf32>
    %c0_6 = arith.constant 0 : index
    %c0_7 = arith.constant 0 : index
    %11 = vector.load %arg3[%c0_6, %c0_7] : memref<1x128xf32, #tpu.memory_space<vmem>>, vector<1x128xf32>
    %12 = vector.broadcast %11 : vector<1x128xf32> to vector<8x128xf32>
    %13 = arith.addf %10, %12 : vector<8x128xf32>
    %cst = arith.constant 0.000000e+00 : f32
    %14 = vector.broadcast %cst : f32 to vector<8x128xf32>
    %15 = arith.maximumf %13, %14 : vector<8x128xf32>
    %c0_8 = arith.constant 0 : index
    %c0_9 = arith.constant 0 : index
    %16 = vector.load %arg4[%c0_8, %c0_9] : memref<128x128xf32, #tpu.memory_space<vmem>>, vector<128x128xf32>
    %c0_10 = arith.constant 0 : index
    %c0_11 = arith.constant 0 : index
    %17 = vector.load %arg5[%c0_10, %c0_11] : memref<1x128xf32, #tpu.memory_space<vmem>>, vector<1x128xf32>
    %cst_12 = arith.constant dense<0.000000e+00> : vector<8x128xf32>
    %18 = tpu.matmul %15, %16, %cst_12 {dimension_numbers = #tpu.dot_dimension_numbers<[1], [0], [0], [1], [0, 0, 1, 1], [], []>} : vector<8x128xf32>, vector<128x128xf32>, vector<8x128xf32> -> vector<8x128xf32>
    %19 = vector.broadcast %17 : vector<1x128xf32> to vector<8x128xf32>
    %20 = arith.addf %18, %19 : vector<8x128xf32>
    %cst_13 = arith.constant 0.000000e+00 : f32
    %21 = vector.broadcast %cst_13 : f32 to vector<8x128xf32>
    %22 = arith.maximumf %20, %21 : vector<8x128xf32>
    %c0_14 = arith.constant 0 : index
    %c0_15 = arith.constant 0 : index
    %23 = vector.load %arg6[%c0_14, %c0_15] : memref<128x128xf32, #tpu.memory_space<vmem>>, vector<128x128xf32>
    %c0_16 = arith.constant 0 : index
    %c0_17 = arith.constant 0 : index
    %24 = vector.load %arg7[%c0_16, %c0_17] : memref<1x128xf32, #tpu.memory_space<vmem>>, vector<1x128xf32>
    %cst_18 = arith.constant dense<0.000000e+00> : vector<8x128xf32>
    %25 = tpu.matmul %22, %23, %cst_18 {dimension_numbers = #tpu.dot_dimension_numbers<[1], [0], [0], [1], [0, 0, 1, 1], [], []>} : vector<8x128xf32>, vector<128x128xf32>, vector<8x128xf32> -> vector<8x128xf32>
    %26 = vector.broadcast %24 : vector<1x128xf32> to vector<8x128xf32>
    %27 = arith.addf %25, %26 : vector<8x128xf32>
    %28 = vector.extract_strided_slice %27 {offsets = [0, 0], sizes = [8, 1], strides = [1, 1]} : vector<8x128xf32> to vector<8x1xf32>
    %c0_19 = arith.constant 0 : index
    %c0_20 = arith.constant 0 : index
    %29 = vector.load %arg8[%c0_19, %c0_20] : memref<8x1xf32, #tpu.memory_space<vmem>>, vector<8x1xf32>
    tpu.vector_store %arg8[%c0_19, %c0_20], %28 {strides = array<i32>} : memref<8x1xf32, #tpu.memory_space<vmem>>, vector<8x1xf32>,
    return
  }
  func.func @transform_0(%arg0: i32) -> (i32, i32) {
    %c0_i32 = arith.constant 0 : i32
    %c0_i32_0 = arith.constant 0 : i32
    return %arg0, %c0_i32 : i32, i32
  }
  func.func @transform_1(%arg0: i32) -> (i32, i32) {
    %c0_i32 = arith.constant 0 : i32
    %c0_i32_0 = arith.constant 0 : i32
    %c0_i32_1 = arith.constant 0 : i32
    return %c0_i32, %c0_i32_0 : i32, i32
  }
  func.func @transform_2(%arg0: i32) -> (i32, i32) {
    %c0_i32 = arith.constant 0 : i32
    %c0_i32_0 = arith.constant 0 : i32
    %c0_i32_1 = arith.constant 0 : i32
    return %c0_i32, %c0_i32_0 : i32, i32
  }
  func.func @transform_3(%arg0: i32) -> (i32, i32) {
    %c0_i32 = arith.constant 0 : i32
    %c0_i32_0 = arith.constant 0 : i32
    %c0_i32_1 = arith.constant 0 : i32
    return %c0_i32, %c0_i32_0 : i32, i32
  }
  func.func @transform_4(%arg0: i32) -> (i32, i32) {
    %c0_i32 = arith.constant 0 : i32
    %c0_i32_0 = arith.constant 0 : i32
    %c0_i32_1 = arith.constant 0 : i32
    return %c0_i32, %c0_i32_0 : i32, i32
  }
  func.func @transform_5(%arg0: i32) -> (i32, i32) {
    %c0_i32 = arith.constant 0 : i32
    %c0_i32_0 = arith.constant 0 : i32
    %c0_i32_1 = arith.constant 0 : i32
    return %c0_i32, %c0_i32_0 : i32, i32
  }
  func.func @transform_6(%arg0: i32) -> (i32, i32) {
    %c0_i32 = arith.constant 0 : i32
    %c0_i32_0 = arith.constant 0 : i32
    %c0_i32_1 = arith.constant 0 : i32
    return %c0_i32, %c0_i32_0 : i32, i32
  }
  func.func @transform_7(%arg0: i32) -> (i32, i32) {
    %c0_i32 = arith.constant 0 : i32
    %c0_i32_0 = arith.constant 0 : i32
    return %arg0, %c0_i32 : i32, i32
  }
}

</mosaic_0001>

<llo_original>
// kernel: tpu_custom_call.1
$region0: #{tpu_custom_call.1}
  #allocation0 [shape = 'u32[]', space=smem, size = 0x4, offset = 0x4, fixed_abs, tag = 'smem constant byte address 0x4 - core index']
  #allocation1 [shape = 'u32[144,128]{1,0:T(1,128)}', space=vmem, size = 0x12000, scoped, tag = 'internal scratch']
  %s0 = inlined_call_operand.vmem [shape: f32[8,2], index: 0, kind: input, shape index: {}]
  %s1 = inlined_call_operand.vmem [shape: f32[2,128], index: 1, kind: input, shape index: {}]
  %s2 = inlined_call_operand.vmem [shape: f32[1,128], index: 2, kind: input, shape index: {}]
  %s3 = inlined_call_operand.hbm [shape: f32[128,128], index: 3, kind: input, shape index: {}]
  %s4 = inlined_call_operand.vmem [shape: f32[1,128], index: 4, kind: input, shape index: {}]
  %s5 = inlined_call_operand.hbm [shape: f32[128,128], index: 5, kind: input, shape index: {}]
  %s6 = inlined_call_operand.vmem [shape: f32[1,128], index: 6, kind: input, shape index: {}]
  %s7 = inlined_call_operand.vmem [shape: f32[8,1], index: 7, kind: output, shape index: {}]
  %s8 = sld [smem:[#allocation0]]
  $region46: #{tpu_custom_call.1} parent=0
    _
  %s10 = ssub.s32 1, %s8
  %s11 = scalar_select 0, %s10, %s8
  $region1: #{tpu_custom_call.1} parent=0
    #allocation2 [shape = 'u8[65536]{0}', space=vmem, size = 0x10000, scoped, tag = 'input window, operand 3, single buffered']
    #allocation3 [shape = 's32[1]{0}', space=sflag, size = 0x4, scoped, tag = 'scoped memory for tpu_custom_call.1']
    #allocation4 [shape = 'u8[65536]{0}', space=vmem, size = 0x10000, scoped, tag = 'input window, operand 5, single buffered']
    #allocation5 [shape = 's32[1]{0}', space=sflag, size = 0x4, scoped, tag = 'scoped memory for tpu_custom_call.1']
    %12 = vsyncpa [#allocation3], 0
    %13 = vsyncpa [#allocation5], 0
    // Predicated region
    $region2: #{tpu_custom_call.1} parent=1 // pred_check
      _
    $region3: #{tpu_custom_call.1} parent=1 // pred_check_branch
      %15 = sbr.rel (0) target = $region5
    $region4: #{tpu_custom_call.1} parent=1 // pred_region
      _
    $region5: #{tpu_custom_call.1} parent=1 // pred_fallthru
      _
    // Predicated region
    $region6: #{tpu_custom_call.1} parent=1 // pred_check
      _
    $region7: #{tpu_custom_call.1} parent=1 // pred_check_branch
      %17 = sbr.rel (0) target = $region9
    $region8: #{tpu_custom_call.1} parent=1 // pred_region
      _
    $region9: #{tpu_custom_call.1} parent=1 // pred_fallthru
      _
    // Predicated region
    $region10: #{tpu_custom_call.1} parent=1 // pred_check
      _
    $region11: #{tpu_custom_call.1} parent=1 // pred_check_branch
      %19 = sbr.rel (0) target = $region13
    $region12: #{tpu_custom_call.1} parent=1 // pred_region
      _
    $region13: #{tpu_custom_call.1} parent=1 // pred_fallthru
      _
    // Predicated region
    $region14: #{tpu_custom_call.1} parent=1 // pred_check
      _
    $region15: #{tpu_custom_call.1} parent=1 // pred_check_branch
      %21 = sbr.rel (0) target = $region17
    $region16: #{tpu_custom_call.1} parent=1 // pred_region
      %s23 = ssub.s32 2048, 2048
      %24 = vsyncadd [#allocation3], %s23
      %s25 = sshll.u32 [#allocation2], 4
      %s26 = int_to_ptr.vmem [resolvable:$true] %s25
      %31 = dma.hbm_to_vmem [thread:$0]  %s3, 2048, %s26, [#allocation3], 128, 128, 8
    $region17: #{tpu_custom_call.1} parent=1 // pred_fallthru
      _
    // Predicated region
    $region18: #{tpu_custom_call.1} parent=1 // pred_check
      _
    $region19: #{tpu_custom_call.1} parent=1 // pred_check_branch
      %33 = sbr.rel (0) target = $region21
    $region20: #{tpu_custom_call.1} parent=1 // pred_region
      _
    $region21: #{tpu_custom_call.1} parent=1 // pred_fallthru
      _
    // Predicated region
    $region22: #{tpu_custom_call.1} parent=1 // pred_check
      _
    $region23: #{tpu_custom_call.1} parent=1 // pred_check_branch
      %35 = sbr.rel (0) target = $region25
    $region24: #{tpu_custom_call.1} parent=1 // pred_region
      %s37 = ssub.s32 2048, 2048
      %38 = vsyncadd [#allocation5], %s37
      %s39 = sshll.u32 [#allocation4], 4
      %s40 = int_to_ptr.vmem [resolvable:$true] %s39
      %45 = dma.hbm_to_vmem [thread:$0]  %s5, 2048, %s40, [#allocation5], 128, 128, 8
    $region25: #{tpu_custom_call.1} parent=1 // pred_fallthru
      _
    // Predicated region
    $region26: #{tpu_custom_call.1} parent=1 // pred_check
      _
    $region27: #{tpu_custom_call.1} parent=1 // pred_check_branch
      %47 = sbr.rel (0) target = $region29
    $region28: #{tpu_custom_call.1} parent=1 // pred_region
      _
    $region29: #{tpu_custom_call.1} parent=1 // pred_fallthru
      _
    // Predicated region
    $region30: #{tpu_custom_call.1} parent=1 // pred_check
      _
    $region31: #{tpu_custom_call.1} parent=1 // pred_check_branch
      %49 = sbr.rel (0) target = $region33
    $region32: #{tpu_custom_call.1} parent=1 // pred_region
      %50 = dma.done [#allocation3], 2048
    $region33: #{tpu_custom_call.1} parent=1 // pred_fallthru
      _
    // Predicated region
    $region34: #{tpu_custom_call.1} parent=1 // pred_check
      _
    $region35: #{tpu_custom_call.1} parent=1 // pred_check_branch
      %52 = sbr.rel (0) target = $region37
    $region36: #{tpu_custom_call.1} parent=1 // pred_region
      %53 = dma.done [#allocation5], 2048
    $region37: #{tpu_custom_call.1} parent=1 // pred_fallthru
      _
    %v54 = vld [vmem:[%s0] sm:$0xff]
    %v55 = vld [vmem:[%s1] sm:$0x1]
    %57 = vset.pattern.permute.xlu0 0
    %58 = vperm.xlu0 %57, %v54
    %v59 = vpop.permute.xlu0 %58
    %v61 = vlaneseq
    %v62 = vshrl.u32 %v61, 7
    %v63 = vsub.s32 0, %v62
    %v64 = vrot.slane %v55, %v63
    %v65 = vmul.f32 %v59, %v64
    %v66 = vld [vmem:[%s1 + $0x1] sm:$0x1]
    %67 = vset.pattern.permute.xlu0 1
    %68 = vperm.xlu0 %67, %v54
    %v69 = vpop.permute.xlu0 %68
    %v71 = vlaneseq
    %v72 = vshrl.u32 %v71, 7
    %v73 = vsub.s32 0, %v72
    %v74 = vrot.slane %v66, %v73
    %v75 = vmul.f32 %v69, %v74
    %v76 = vadd.f32 %v65, %v75
    %v77 = vld [vmem:[%s2] sm:$0x1]
    %v79 = vlaneseq
    %v80 = vshrl.u32 %v79, 7
    %v81 = vsub.s32 0, %v80
    %v82 = vrot.slane %v77, %v81
    %v84 = vadd.f32 %v76, %v82
    %v85 = vmax.f32 %v84, 0.0
    %v86 = vld [vmem:[#allocation2] sm:$0xff]
    %v87 = vld [vmem:[#allocation2 + $0x8] sm:$0xff]
    %v88 = vld [vmem:[#allocation2 + $0x10] sm:$0xff]
    %v89 = vld [vmem:[#allocation2 + $0x18] sm:$0xff]
    %v90 = vld [vmem:[#allocation2 + $0x20] sm:$0xff]
    %v91 = vld [vmem:[#allocation2 + $0x28] sm:$0xff]
    %v92 = vld [vmem:[#allocation2 + $0x30] sm:$0xff]
    %v93 = vld [vmem:[#allocation2 + $0x38] sm:$0xff]
    %v94 = vld [vmem:[#allocation2 + $0x40] sm:$0xff]
    %v95 = vld [vmem:[#allocation2 + $0x48] sm:$0xff]
    %v96 = vld [vmem:[#allocation2 + $0x50] sm:$0xff]
    %v97 = vld [vmem:[#allocation2 + $0x58] sm:$0xff]
    %v98 = vld [vmem:[#allocation2 + $0x60] sm:$0xff]
    %v99 = vld [vmem:[#allocation2 + $0x68] sm:$0xff]
    %v100 = vld [vmem:[#allocation2 + $0x70] sm:$0xff]
    %v101 = vld [vmem:[#allocation2 + $0x78] sm:$0xff]
    %v102 = vld [vmem:[%s4] sm:$0x1]
    %v104 = vlaneseq
    %v105 = vshrl.u32 %v104, 7
    %v106 = vsub.s32 0, %v105
    %v107 = vrot.slane %v102, %v106
    %109 = vmatprep.subr.mxu0 0.0
    %110 = vmatpush1.msra.mxu0 %v101
    %111 = vmatprep.subr.mxu0 0.0
    %112 = vmatpush1.msra.mxu0 %v100
    %113 = vmatprep.subr.mxu0 0.0
    %114 = vmatpush1.msra.mxu0 %v99
    %115 = vmatprep.subr.mxu0 0.0
    %116 = vmatpush1.msra.mxu0 %v98
    %117 = vmatprep.subr.mxu0 0.0
    %118 = vmatpush1.msra.mxu0 %v97
    %119 = vmatprep.subr.mxu0 0.0
    %120 = vmatpush1.msra.mxu0 %v96
    %121 = vmatprep.subr.mxu0 0.0
    %122 = vmatpush1.msra.mxu0 %v95
    %123 = vmatprep.subr.mxu0 0.0
    %124 = vmatpush1.msra.mxu0 %v94
    %125 = vmatprep.subr.mxu0 0.0
    %126 = vmatpush1.msra.mxu0 %v93
    %127 = vmatprep.subr.mxu0 0.0
    %128 = vmatpush1.msra.mxu0 %v92
    %129 = vmatprep.subr.mxu0 0.0
    %130 = vmatpush1.msra.mxu0 %v91
    %131 = vmatprep.subr.mxu0 0.0
    %132 = vmatpush1.msra.mxu0 %v90
    %133 = vmatprep.subr.mxu0 0.0
    %134 = vmatpush1.msra.mxu0 %v89
    %135 = vmatprep.subr.mxu0 0.0
    %136 = vmatpush1.msra.mxu0 %v88
    %137 = vmatprep.subr.mxu0 0.0
    %138 = vmatpush1.msra.mxu0 %v87
    %139 = vmatprep.subr.mxu0 0.0
    %140 = vmatpush1.msra.mxu0 %v86
    %141 = vmatprep.subr.mxu0 0.0
    %142 = vmatpush2.msra.mxu0 0.0
    %143 = vmatprep.subr.mxu0 0.0
    %144 = vmatpush2.msra.mxu0 0.0
    %145 = vmatprep.subr.mxu0 0.0
    %146 = vmatpush2.msra.mxu0 0.0
    %147 = vmatprep.subr.mxu0 0.0
    %148 = vmatpush2.msra.mxu0 0.0
    %149 = vmatprep.subr.mxu0 0.0
    %150 = vmatpush2.msra.mxu0 0.0
    %151 = vmatprep.subr.mxu0 0.0
    %152 = vmatpush2.msra.mxu0 0.0
    %153 = vmatprep.subr.mxu0 0.0
    %154 = vmatpush2.msra.mxu0 0.0
    %155 = vmatprep.subr.mxu0 0.0
    %156 = vmatpush2.msra.mxu0 0.0
    %157 = vmatprep.subr.mxu0 0.0
    %158 = vmatpush2.msra.mxu0 0.0
    %159 = vmatprep.subr.mxu0 0.0
    %160 = vmatpush2.msra.mxu0 0.0
    %161 = vmatprep.subr.mxu0 0.0
    %162 = vmatpush2.msra.mxu0 0.0
    %163 = vmatprep.subr.mxu0 0.0
    %164 = vmatpush2.msra.mxu0 0.0
    %165 = vmatprep.subr.mxu0 0.0
    %166 = vmatpush2.msra.mxu0 0.0
    %167 = vmatprep.subr.mxu0 0.0
    %168 = vmatpush2.msra.mxu0 0.0
    %169 = vmatprep.subr.mxu0 0.0
    %170 = vmatpush2.msra.mxu0 0.0
    %171 = vmatprep.subr.mxu0 0.0
    %172 = vmatpush2.msra.mxu0 0.0
    %173 = vmatprep.mubr.f32.mxu0 0.0
    %174 = vmatmul.mubr.f32.gmra.mxu0 %v85
    %v175 = vpop.f32.mrf.mxu0
    %v176 = vadd.f32 %v107, %v175
    %v177 = vpop.f32.mrf.mxu0
    %178 = vdwg.mxu0
    %v179 = vmax.f32 %v176, 0.0
    %v180 = vld [vmem:[#allocation4] sm:$0xff]
    %v181 = vld [vmem:[#allocation4 + $0x8] sm:$0xff]
    %v182 = vld [vmem:[#allocation4 + $0x10] sm:$0xff]
    %v183 = vld [vmem:[#allocation4 + $0x18] sm:$0xff]
    %v184 = vld [vmem:[#allocation4 + $0x20] sm:$0xff]
    %v185 = vld [vmem:[#allocation4 + $0x28] sm:$0xff]
    %v186 = vld [vmem:[#allocation4 + $0x30] sm:$0xff]
    %v187 = vld [vmem:[#allocation4 + $0x38] sm:$0xff]
    %v188 = vld [vmem:[#allocation4 + $0x40] sm:$0xff]
    %v189 = vld [vmem:[#allocation4 + $0x48] sm:$0xff]
    %v190 = vld [vmem:[#allocation4 + $0x50] sm:$0xff]
    %v191 = vld [vmem:[#allocation4 + $0x58] sm:$0xff]
    %v192 = vld [vmem:[#allocation4 + $0x60] sm:$0xff]
    %v193 = vld [vmem:[#allocation4 + $0x68] sm:$0xff]
    %v194 = vld [vmem:[#allocation4 + $0x70] sm:$0xff]
    %v195 = vld [vmem:[#allocation4 + $0x78] sm:$0xff]
    %v196 = vld [vmem:[%s6] sm:$0x1]
    %v198 = vlaneseq
    %v199 = vshrl.u32 %v198, 7
    %v200 = vsub.s32 0, %v199
    %v201 = vrot.slane %v196, %v200
    %203 = vmatprep.subr.mxu0 0.0
    %204 = vmatpush1.msra.mxu0 %v195
    %205 = vmatprep.subr.mxu0 0.0
    %206 = vmatpush1.msra.mxu0 %v194
    %207 = vmatprep.subr.mxu0 0.0
    %208 = vmatpush1.msra.mxu0 %v193
    %209 = vmatprep.subr.mxu0 0.0
    %210 = vmatpush1.msra.mxu0 %v192
    %211 = vmatprep.subr.mxu0 0.0
    %212 = vmatpush1.msra.mxu0 %v191
    %213 = vmatprep.subr.mxu0 0.0
    %214 = vmatpush1.msra.mxu0 %v190
    %215 = vmatprep.subr.mxu0 0.0
    %216 = vmatpush1.msra.mxu0 %v189
    %217 = vmatprep.subr.mxu0 0.0
    %218 = vmatpush1.msra.mxu0 %v188
    %219 = vmatprep.subr.mxu0 0.0
    %220 = vmatpush1.msra.mxu0 %v187
    %221 = vmatprep.subr.mxu0 0.0
    %222 = vmatpush1.msra.mxu0 %v186
    %223 = vmatprep.subr.mxu0 0.0
    %224 = vmatpush1.msra.mxu0 %v185
    %225 = vmatprep.subr.mxu0 0.0
    %226 = vmatpush1.msra.mxu0 %v184
    %227 = vmatprep.subr.mxu0 0.0
    %228 = vmatpush1.msra.mxu0 %v183
    %229 = vmatprep.subr.mxu0 0.0
    %230 = vmatpush1.msra.mxu0 %v182
    %231 = vmatprep.subr.mxu0 0.0
    %232 = vmatpush1.msra.mxu0 %v181
    %233 = vmatprep.subr.mxu0 0.0
    %234 = vmatpush1.msra.mxu0 %v180
    %235 = vmatprep.subr.mxu0 0.0
    %236 = vmatpush2.msra.mxu0 0.0
    %237 = vmatprep.subr.mxu0 0.0
    %238 = vmatpush2.msra.mxu0 0.0
    %239 = vmatprep.subr.mxu0 0.0
    %240 = vmatpush2.msra.mxu0 0.0
    %241 = vmatprep.subr.mxu0 0.0
    %242 = vmatpush2.msra.mxu0 0.0
    %243 = vmatprep.subr.mxu0 0.0
    %244 = vmatpush2.msra.mxu0 0.0
    %245 = vmatprep.subr.mxu0 0.0
    %246 = vmatpush2.msra.mxu0 0.0
    %247 = vmatprep.subr.mxu0 0.0
    %248 = vmatpush2.msra.mxu0 0.0
    %249 = vmatprep.subr.mxu0 0.0
    %250 = vmatpush2.msra.mxu0 0.0
    %251 = vmatprep.subr.mxu0 0.0
    %252 = vmatpush2.msra.mxu0 0.0
    %253 = vmatprep.subr.mxu0 0.0
    %254 = vmatpush2.msra.mxu0 0.0
    %255 = vmatprep.subr.mxu0 0.0
    %256 = vmatpush2.msra.mxu0 0.0
    %257 = vmatprep.subr.mxu0 0.0
    %258 = vmatpush2.msra.mxu0 0.0
    %259 = vmatprep.subr.mxu0 0.0
    %260 = vmatpush2.msra.mxu0 0.0
    %261 = vmatprep.subr.mxu0 0.0
    %262 = vmatpush2.msra.mxu0 0.0
    %263 = vmatprep.subr.mxu0 0.0
    %264 = vmatpush2.msra.mxu0 0.0
    %265 = vmatprep.subr.mxu0 0.0
    %266 = vmatpush2.msra.mxu0 0.0
    %267 = vmatprep.mubr.f32.mxu0 0.0
    %268 = vmatmul.mubr.f32.gmra.mxu0 %v179
    %v269 = vpop.f32.mrf.mxu0
    %v270 = vadd.f32 %v201, %v269
    %v271 = vpop.f32.mrf.mxu0
    %272 = vdwg.mxu0
    %vm273 = vcmask 7168
    %274 = vst.msk [vmem:[%s7] sm:$0xff] %vm273, %v270
    // Predicated region
    $region38: #{tpu_custom_call.1} parent=1 // pred_check
      _
    $region39: #{tpu_custom_call.1} parent=1 // pred_check_branch
      %276 = sbr.rel (0) target = $region41
    $region40: #{tpu_custom_call.1} parent=1 // pred_region
      _
    $region41: #{tpu_custom_call.1} parent=1 // pred_fallthru
      _
    // Predicated region
    $region42: #{tpu_custom_call.1} parent=1 // pred_check
      _
    $region43: #{tpu_custom_call.1} parent=1 // pred_check_branch
      %278 = sbr.rel (0) target = $region45
    $region44: #{tpu_custom_call.1} parent=1 // pred_region
      _
    $region45: #{tpu_custom_call.1} parent=1 // pred_fallthru
      _
    %279 = vsyncpa [#allocation3], 1
    %280 = vsyncpa [#allocation5], 1

</llo_original>
